<compile_context>
chip_gen: v7x
topology: tpu7x:2x2x1
jax: 0.10.0
libtpu: 0.0.40
codegen_flags: <defaults>
</compile_context>

<pallas_src>
import functools

import jax
import jax.numpy as jnp
from jax import lax
from jax.experimental import pallas as pl
from jax.experimental.pallas import tpu as pltpu


def _round_up(x: int, m: int) -> int:
    return -(-x // m) * m


def _cdiv(x: int, m: int) -> int:
    return -(-x // m)


def _hw_info():
    """Returns (vmem_capacity_bytes, num_tensorcores) with safe fallbacks."""
    vmem_cap = 128 * (1 << 20)
    num_tc = 1
    try:
        info = pltpu.get_tpu_info()
        vmem_cap = int(getattr(info, "vmem_capacity_bytes", vmem_cap))
    except Exception:
        pass
    kind = ""
    try:
        kind = jax.devices()[0].device_kind.lower()
    except Exception:
        pass
    if ("v7" in kind) or ("7x" in kind):
        num_tc = 2
        vmem_cap = min(vmem_cap, 64 * (1 << 20))
    return vmem_cap, num_tc


def _gram_kernel(x_ref, o_ref, *, tm, tk, k_valid, nk_per_core, need_kmask,
                 sliced_lhs, scale):
    # x_ref: (m_pad, tk)  all feature rows for this K tile (single deduped stream)
    # o_ref: (tm, m_pad)  f32 output block, resident across the K grid axis
    c = pl.program_id(0)          # split-K core index (grid size 1 or 2)
    k = pl.program_id(2)          # K-reduction step (innermost, "arbitrary")

    @pl.when(k == 0)
    def _():
        o_ref[...] = jnp.zeros_like(o_ref)

    gblk = c * nk_per_core + k    # global K-block index

    def mask_tail(v):
        # zero out lanes beyond the true K extent (ragged last tile)
        lane = lax.broadcasted_iota(jnp.int32, v.shape, 1)
        return jnp.where(gblk * tk + lane < k_valid, v, jnp.zeros_like(v))

    x = x_ref[...]
    if need_kmask:                # static: only when the last K tile is ragged
        x = mask_tail(x)

    if sliced_lhs:                # static: only when there are multiple row blocks
        row = pl.multiple_of(pl.program_id(1) * tm, tm)
        lhs = x_ref[pl.ds(row, tm), :]
        if need_kmask:
            lhs = mask_tail(lhs)
    else:
        lhs = x                   # common case: tm == m_pad, lhs is rhs

    # (tm, tk) x (m_pad, tk) -> (tm, m_pad): contract the lane dims of both
    # operands (no transpose through the XLU), native dtype in, f32 accumulation.
    o_ref[...] += lax.dot_general(
        lhs, x,
        dimension_numbers=(((1,), (1,)), ((), ())),
        preferred_element_type=jnp.float32,
    )

    @pl.when(k == pl.num_programs(2) - 1)
    def _():
        o_ref[...] = o_ref[...] * scale


def style_matrix(inp: jax.Array, *,
                 vmem_data_budget_bytes: int | None = None,
                 vmem_limit_bytes: int | None = None) -> jax.Array:
    """Gram matrix of an NCHW tensor (StyleMatrix.forward), computed on the MXU."""
    a, b, c, d = inp.shape
    M = a * b
    K = c * d
    scale = 1.0 / float(a * b * c * d)

    # Glue: flatten NCHW -> (M, K) features, like torch .view(a*b, c*d).
    features = inp.reshape(M, K)
    in_bytes = jnp.dtype(features.dtype).itemsize

    # --- per-generation VMEM budgets ---------------------------------------
    vmem_cap, num_tc = _hw_info()
    if vmem_data_budget_bytes is None:
        vmem_data_budget_bytes = vmem_cap // 2            # ~50% of capacity
    if vmem_limit_bytes is None:
        vmem_limit_bytes = (vmem_cap * 7) // 10           # ~70% of capacity

    # --- row tiling ---------------------------------------------------------
    sublane = max(8, 32 // in_bytes)      # 8 f32, 16 bf16, 32 int8/fp8
    m_pad = max(128, _round_up(M, sublane))

    out_full_bytes = 2 * m_pad * m_pad * 4                # double-buffer conservative
    if out_full_bytes <= (vmem_data_budget_bytes * 6) // 10:
        tm = m_pad                                        # read-features-once path
    else:
        # Fallback for very large M: row-tile the output (rhs slab is then
        # re-streamed once per row block).
        # TODO(synk): add a column (j) tiling axis for M beyond ~16k rows,
        # where even a (m_pad, 128) rhs slab no longer fits VMEM.
        tm_budget = (vmem_data_budget_bytes // 2) // (2 * m_pad * 4)
        tm = min(m_pad, max(8, (tm_budget // 8) * 8))
        m_pad = _round_up(m_pad, tm)      # keep the in-kernel pl.ds in bounds
    grid_i = m_pad // tm

    # --- K tiling (>= ~8 pipeline steps, within the VMEM budget) ------------
    out_block_bytes = 2 * tm * m_pad * 4
    per_tk_bytes = 2 * m_pad * in_bytes                   # single deduped stream
    tk_budget = max(0, vmem_data_budget_bytes - out_block_bytes) // per_tk_bytes
    tk_max = max(128, (tk_budget // 128) * 128)
    tk = min(tk_max, max(512, _round_up(_cdiv(K, 8), 128)))
    if tk >= K:
        tk = K                                            # single full-width tile
    nk_total = _cdiv(K, tk)

    # --- optional split-K across 2 TensorCores (v7x) -------------------------
    num_kc = 1
    if num_tc >= 2 and grid_i == 1 and nk_total >= 4:
        if nk_total % 2 != 0:
            tk2 = max(128, _round_up(_cdiv(K, nk_total + 1), 128))
            nk2 = _cdiv(K, tk2)
            if nk2 % 2 == 0 and nk2 >= 4 and tk2 <= tk_max:
                tk, nk_total = tk2, nk2
        if nk_total % 2 == 0:
            num_kc = 2
    nk_per_core = nk_total // num_kc
    need_kmask = (nk_total * tk != K)

    # --- pad rows only (cheap); K stays unpadded, ragged tail masked in-kernel
    if m_pad != M:
        features = jnp.pad(features, ((0, m_pad - M), (0, 0)))

    grid = (num_kc, grid_i, nk_per_core)
    kernel = functools.partial(
        _gram_kernel, tm=tm, tk=tk, k_valid=K, nk_per_core=nk_per_core,
        need_kmask=need_kmask, sliced_lhs=(grid_i > 1), scale=scale)

    g_parts = pl.pallas_call(
        kernel,
        out_shape=jax.ShapeDtypeStruct((num_kc, m_pad, m_pad), jnp.float32),
        grid_spec=pltpu.PrefetchScalarGridSpec(
            num_scalar_prefetch=0,
            grid=grid,
            in_specs=[
                # Single input stream: all rows of features for this K tile.
                pl.BlockSpec((m_pad, tk),
                             lambda c_, i_, k_: (0, c_ * nk_per_core + k_)),
            ],
            out_specs=pl.BlockSpec((None, tm, m_pad),
                                   lambda c_, i_, k_: (c_, i_, 0)),
        ),
        compiler_params=pltpu.CompilerParams(
            dimension_semantics=("parallel", "parallel", "arbitrary"),
            vmem_limit_bytes=int(vmem_limit_bytes),
        ),
    )(features)

    g = g_parts.sum(axis=0)        # trivial add of split-K partials (no-op if num_kc==1)
    return g[:M, :M].astype(inp.dtype)


def style_matrix_ref(inp: jax.Array) -> jax.Array:
    a, b, c, d = inp.shape
    f = inp.reshape(a * b, c * d).astype(jnp.float32)
    return (f @ f.T) / (a * b * c * d)


if __name__ == "__main__":
    key = jax.random.PRNGKey(0)

    # Small NCHW input consistent with the module's forward.
    x = jax.random.normal(key, (2, 4, 16, 16), dtype=jnp.float32)
    g = jax.block_until_ready(style_matrix(x))
    g_ref = style_matrix_ref(x)
    assert g.shape == (2 * 4, 2 * 4)
    # MXU f32 matmuls use bf16 passes at default precision -> small tolerance.
    assert jnp.allclose(g, g_ref, atol=1e-4, rtol=1e-3), "mismatch vs reference"

    # Second tiny case with ragged K (exercises the in-kernel tail mask path).
    key2 = jax.random.PRNGKey(0)
    x2 = jax.random.normal(key2, (2, 8, 20, 30), dtype=jnp.float32)  # K=600
    g2 = jax.block_until_ready(style_matrix(x2))
    g2_ref = style_matrix_ref(x2)
    assert g2.shape == (2 * 8, 2 * 8)
    assert jnp.allclose(g2, g2_ref, atol=1e-4, rtol=1e-3), "mismatch vs reference (ragged K)"

    print("KERNEL_OK")
</pallas_src>

<mosaic_0001>
module attributes {stable_mosaic.version = 11 : i64} {
  func.func @_gram_kernel(%arg0: i32, %arg1: i32, %arg2: i32, %arg3: memref<128x256xf32, #tpu.memory_space<vmem>>, %arg4: memref<1x128x128xf32, #tpu.memory_space<vmem>>) attributes {dimension_semantics = [#tpu.dimension_semantics<parallel>, #tpu.dimension_semantics<parallel>, #tpu.dimension_semantics<arbitrary>], iteration_bounds = array<i64: 1, 1, 1>, scalar_prefetch = 0 : i64, scratch_operands = 0 : i64, tpu.core_type = #tpu.core_type<tc>, window_params = [{transform_indices = @transform_0, window_bounds = array<i64: 128, 256>}, {transform_indices = @transform_1, window_bounds = array<i64: 1, 128, 128>}]} {
    %c0_i32 = arith.constant 0 : i32
    %0 = arith.cmpi eq, %arg2, %c0_i32 : i32
    %1 = arith.extui %0 : i1 to i32
    %c0_i32_0 = arith.constant 0 : i32
    %2 = arith.cmpi ne, %1, %c0_i32_0 : i32
    scf.if %2 {
      %cst_10 = arith.constant 0.000000e+00 : f32
      %14 = vector.broadcast %cst_10 : f32 to vector<128x128xf32>
      %c0_11 = arith.constant 0 : index
      %c0_12 = arith.constant 0 : index
      %c0_13 = arith.constant 0 : index
      %15 = vector.load %arg4[%c0_11, %c0_12, %c0_13] : memref<1x128x128xf32, #tpu.memory_space<vmem>>, vector<1x128x128xf32>
      %16 = vector.shape_cast %15 : vector<1x128x128xf32> to vector<128x128xf32>
      %17 = vector.shape_cast %14 : vector<128x128xf32> to vector<1x128x128xf32>
      tpu.vector_store %arg4[%c0_11, %c0_12, %c0_13], %17 {strides = array<i32>} : memref<1x128x128xf32, #tpu.memory_space<vmem>>, vector<1x128x128xf32>,
    } else {
    }
    %c0 = arith.constant 0 : index
    %c0_1 = arith.constant 0 : index
    %3 = vector.load %arg3[%c0, %c0_1] : memref<128x256xf32, #tpu.memory_space<vmem>>, vector<128x256xf32>
    %c0_2 = arith.constant 0 : index
    %c0_3 = arith.constant 0 : index
    %c0_4 = arith.constant 0 : index
    %4 = vector.load %arg4[%c0_2, %c0_3, %c0_4] : memref<1x128x128xf32, #tpu.memory_space<vmem>>, vector<1x128x128xf32>
    %5 = vector.shape_cast %4 : vector<1x128x128xf32> to vector<128x128xf32>
    %cst = arith.constant dense<0.000000e+00> : vector<128x128xf32>
    %6 = tpu.matmul %3, %3, %cst {dimension_numbers = #tpu.dot_dimension_numbers<[1], [1], [0], [0], [0, 0, 1, 0], [], []>} : vector<128x256xf32>, vector<128x256xf32>, vector<128x128xf32> -> vector<128x128xf32>
    %7 = arith.addf %5, %6 : vector<128x128xf32>
    %c0_5 = arith.constant 0 : index
    %c0_6 = arith.constant 0 : index
    %c0_7 = arith.constant 0 : index
    %8 = vector.load %arg4[%c0_5, %c0_6, %c0_7] : memref<1x128x128xf32, #tpu.memory_space<vmem>>, vector<1x128x128xf32>
    %9 = vector.shape_cast %8 : vector<1x128x128xf32> to vector<128x128xf32>
    %10 = vector.shape_cast %7 : vector<128x128xf32> to vector<1x128x128xf32>
    tpu.vector_store %arg4[%c0_5, %c0_6, %c0_7], %10 {strides = array<i32>} : memref<1x128x128xf32, #tpu.memory_space<vmem>>, vector<1x128x128xf32>,
    %c0_i32_8 = arith.constant 0 : i32
    %11 = arith.cmpi eq, %arg2, %c0_i32_8 : i32
    %12 = arith.extui %11 : i1 to i32
    %c0_i32_9 = arith.constant 0 : i32
    %13 = arith.cmpi ne, %12, %c0_i32_9 : i32
    scf.if %13 {
      %c0_10 = arith.constant 0 : index
      %c0_11 = arith.constant 0 : index
      %c0_12 = arith.constant 0 : index
      %14 = vector.load %arg4[%c0_10, %c0_11, %c0_12] : memref<1x128x128xf32, #tpu.memory_space<vmem>>, vector<1x128x128xf32>
      %15 = vector.shape_cast %14 : vector<1x128x128xf32> to vector<128x128xf32>
      %cst_13 = arith.constant 4.8828125E-4 : f32
      %16 = vector.broadcast %cst_13 : f32 to vector<128x128xf32>
      %17 = arith.mulf %15, %16 : vector<128x128xf32>
      %c0_14 = arith.constant 0 : index
      %c0_15 = arith.constant 0 : index
      %c0_16 = arith.constant 0 : index
      %18 = vector.load %arg4[%c0_14, %c0_15, %c0_16] : memref<1x128x128xf32, #tpu.memory_space<vmem>>, vector<1x128x128xf32>
      %19 = vector.shape_cast %18 : vector<1x128x128xf32> to vector<128x128xf32>
      %20 = vector.shape_cast %17 : vector<128x128xf32> to vector<1x128x128xf32>
      tpu.vector_store %arg4[%c0_14, %c0_15, %c0_16], %20 {strides = array<i32>} : memref<1x128x128xf32, #tpu.memory_space<vmem>>, vector<1x128x128xf32>,
    } else {
    }
    return
  }
  func.func @transform_0(%arg0: i32, %arg1: i32, %arg2: i32) -> (i32, i32) {
    %c1_i32 = arith.constant 1 : i32
    %0 = arith.muli %arg0, %c1_i32 : i32
    %1 = arith.addi %0, %arg2 : i32
    %c0_i32 = arith.constant 0 : i32
    %c0_i32_0 = arith.constant 0 : i32
    return %c0_i32, %1 : i32, i32
  }
  func.func @transform_1(%arg0: i32, %arg1: i32, %arg2: i32) -> (i32, i32, i32) {
    %c0_i32 = arith.constant 0 : i32
    %c0_i32_0 = arith.constant 0 : i32
    return %arg0, %arg1, %c0_i32 : i32, i32, i32
  }
}

</mosaic_0001>

<llo_original>
// kernel: tpu_custom_call.1
$region0: #{tpu_custom_call.1}
  #allocation0 [shape = 'u32[]', space=smem, size = 0x4, offset = 0x4, fixed_abs, tag = 'smem constant byte address 0x4 - core index']
  #allocation1 [shape = 'u32[144,128]{1,0:T(1,128)}', space=vmem, size = 0x12000, scoped, tag = 'internal scratch']
  %s0 = inlined_call_operand.hbm [shape: f32[128,256], index: 0, kind: input, shape index: {}]
  %s1 = inlined_call_operand.hbm [shape: f32[1,128,128], index: 1, kind: output, shape index: {}]
  %s2 = sld [smem:[#allocation0]]
  $region26: #{tpu_custom_call.1} parent=0
    _
  %s4 = ssub.s32 1, %s2
  %s5 = scalar_select 0, %s4, %s2
  $region1: #{tpu_custom_call.1} parent=0
    #allocation2 [shape = 'u8[131072]{0}', space=vmem, size = 0x20000, scoped, tag = 'input window, operand 0, single buffered']
    #allocation3 [shape = 's32[1]{0}', space=sflag, size = 0x4, scoped, tag = 'scoped memory for tpu_custom_call.1']
    #allocation4 [shape = 's32[1]{0}', space=sflag, size = 0x4, scoped, tag = 'scoped memory for tpu_custom_call.1']
    #allocation5 [shape = 'u8[65536]{0}', space=vmem, size = 0x10000, scoped, tag = 'output window, operand 0, single buffered']
    %6 = vsyncpa [#allocation3], 0
    %7 = vsyncpa [#allocation4], 0
    // Predicated region
    $region2: #{tpu_custom_call.1} parent=1 // pred_check
      _
    $region3: #{tpu_custom_call.1} parent=1 // pred_check_branch
      %9 = sbr.rel (0) target = $region5
    $region4: #{tpu_custom_call.1} parent=1 // pred_region
      %s10 = sadd.s32 0, 0
      %s11 = smul.u32 2, %s10
      %s13 = ssub.s32 4096, 4096
      %14 = vsyncadd [#allocation3], %s13
      %s15 = smul.addr %s11, 128
      %s16 = scalar_lea.hbm %s0, %s15
      %s17 = sshll.u32 [#allocation2], 4
      %s18 = int_to_ptr.vmem [resolvable:$true] %s17
      %23 = dma.hbm_to_vmem [thread:$0]  %s16, 4096, %s18, [#allocation3], 256, 256, 16
    $region5: #{tpu_custom_call.1} parent=1 // pred_fallthru
      _
    // Predicated region
    $region6: #{tpu_custom_call.1} parent=1 // pred_check
      _
    $region7: #{tpu_custom_call.1} parent=1 // pred_check_branch
      %25 = sbr.rel (0) target = $region9
    $region8: #{tpu_custom_call.1} parent=1 // pred_region
      %26 = dma.done [#allocation3], 4096
    $region9: #{tpu_custom_call.1} parent=1 // pred_fallthru
      _
    %s27 = sadd.s32 0, 0
    %s28 = smul.u32 2, %s27
    %p29 = scmp.eq.s32.totalorder 0, 0
    // Predicated region
    $region10: #{tpu_custom_call.1} parent=1 // pred_check
      %p30 = pneg %p29
    $region11: #{tpu_custom_call.1} parent=1 // pred_check_branch
      %32 = sbr.rel (%p30) target = $region13
    $region12: #{tpu_custom_call.1} parent=1 // pred_region
      %33 = vst [vmem:[#allocation5] sm:$0xff] 0.0
      %34 = vst [vmem:[#allocation5 + $0x8] sm:$0xff] 0.0
      %35 = vst [vmem:[#allocation5 + $0x10] sm:$0xff] 0.0
      %36 = vst [vmem:[#allocation5 + $0x18] sm:$0xff] 0.0
      %37 = vst [vmem:[#allocation5 + $0x20] sm:$0xff] 0.0
      %38 = vst [vmem:[#allocation5 + $0x28] sm:$0xff] 0.0
      %39 = vst [vmem:[#allocation5 + $0x30] sm:$0xff] 0.0
      %40 = vst [vmem:[#allocation5 + $0x38] sm:$0xff] 0.0
      %41 = vst [vmem:[#allocation5 + $0x40] sm:$0xff] 0.0
      %42 = vst [vmem:[#allocation5 + $0x48] sm:$0xff] 0.0
      %43 = vst [vmem:[#allocation5 + $0x50] sm:$0xff] 0.0
      %44 = vst [vmem:[#allocation5 + $0x58] sm:$0xff] 0.0
      %45 = vst [vmem:[#allocation5 + $0x60] sm:$0xff] 0.0
      %46 = vst [vmem:[#allocation5 + $0x68] sm:$0xff] 0.0
      %47 = vst [vmem:[#allocation5 + $0x70] sm:$0xff] 0.0
      %48 = vst [vmem:[#allocation5 + $0x78] sm:$0xff] 0.0
    $region13: #{tpu_custom_call.1} parent=1 // pred_fallthru
      _
    %v49 = vld [vmem:[#allocation2] sm:$0xff]
    %v50 = vld [vmem:[#allocation2 + $0x8] sm:$0xff]
    %v51 = vld [vmem:[#allocation2 + $0x10] sm:$0xff]
    %v52 = vld [vmem:[#allocation2 + $0x18] sm:$0xff]
    %v53 = vld [vmem:[#allocation2 + $0x20] sm:$0xff]
    %v54 = vld [vmem:[#allocation2 + $0x28] sm:$0xff]
    %v55 = vld [vmem:[#allocation2 + $0x30] sm:$0xff]
    %v56 = vld [vmem:[#allocation2 + $0x38] sm:$0xff]
    %v57 = vld [vmem:[#allocation2 + $0x40] sm:$0xff]
    %v58 = vld [vmem:[#allocation2 + $0x48] sm:$0xff]
    %v59 = vld [vmem:[#allocation2 + $0x50] sm:$0xff]
    %v60 = vld [vmem:[#allocation2 + $0x58] sm:$0xff]
    %v61 = vld [vmem:[#allocation2 + $0x60] sm:$0xff]
    %v62 = vld [vmem:[#allocation2 + $0x68] sm:$0xff]
    %v63 = vld [vmem:[#allocation2 + $0x70] sm:$0xff]
    %v64 = vld [vmem:[#allocation2 + $0x78] sm:$0xff]
    %v65 = vld [vmem:[#allocation2 + $0x80] sm:$0xff]
    %v66 = vld [vmem:[#allocation2 + $0x88] sm:$0xff]
    %v67 = vld [vmem:[#allocation2 + $0x90] sm:$0xff]
    %v68 = vld [vmem:[#allocation2 + $0x98] sm:$0xff]
    %v69 = vld [vmem:[#allocation2 + $0xa0] sm:$0xff]
    %v70 = vld [vmem:[#allocation2 + $0xa8] sm:$0xff]
    %v71 = vld [vmem:[#allocation2 + $0xb0] sm:$0xff]
    %v72 = vld [vmem:[#allocation2 + $0xb8] sm:$0xff]
    %v73 = vld [vmem:[#allocation2 + $0xc0] sm:$0xff]
    %v74 = vld [vmem:[#allocation2 + $0xc8] sm:$0xff]
    %v75 = vld [vmem:[#allocation2 + $0xd0] sm:$0xff]
    %v76 = vld [vmem:[#allocation2 + $0xd8] sm:$0xff]
    %v77 = vld [vmem:[#allocation2 + $0xe0] sm:$0xff]
    %v78 = vld [vmem:[#allocation2 + $0xe8] sm:$0xff]
    %v79 = vld [vmem:[#allocation2 + $0xf0] sm:$0xff]
    %v80 = vld [vmem:[#allocation2 + $0xf8] sm:$0xff]
    %v81 = vld [vmem:[#allocation5] sm:$0xff]
    %v82 = vld [vmem:[#allocation5 + $0x8] sm:$0xff]
    %v83 = vld [vmem:[#allocation5 + $0x10] sm:$0xff]
    %v84 = vld [vmem:[#allocation5 + $0x18] sm:$0xff]
    %v85 = vld [vmem:[#allocation5 + $0x20] sm:$0xff]
    %v86 = vld [vmem:[#allocation5 + $0x28] sm:$0xff]
    %v87 = vld [vmem:[#allocation5 + $0x30] sm:$0xff]
    %v88 = vld [vmem:[#allocation5 + $0x38] sm:$0xff]
    %v89 = vld [vmem:[#allocation5 + $0x40] sm:$0xff]
    %v90 = vld [vmem:[#allocation5 + $0x48] sm:$0xff]
    %v91 = vld [vmem:[#allocation5 + $0x50] sm:$0xff]
    %v92 = vld [vmem:[#allocation5 + $0x58] sm:$0xff]
    %v93 = vld [vmem:[#allocation5 + $0x60] sm:$0xff]
    %v94 = vld [vmem:[#allocation5 + $0x68] sm:$0xff]
    %v95 = vld [vmem:[#allocation5 + $0x70] sm:$0xff]
    %v96 = vld [vmem:[#allocation5 + $0x78] sm:$0xff]
    %97 = vmatprep.subr.mxu0 %v50
    %98 = vmatpush1.xpose.msra.mxu0 %v49
    %99 = vmatprep.subr.mxu0 %v52
    %100 = vmatpush1.xpose.msra.mxu0 %v51
    %101 = vmatprep.subr.mxu0 %v54
    %102 = vmatpush1.xpose.msra.mxu0 %v53
    %103 = vmatprep.subr.mxu0 %v56
    %104 = vmatpush1.xpose.msra.mxu0 %v55
    %105 = vmatprep.subr.mxu0 %v58
    %106 = vmatpush1.xpose.msra.mxu0 %v57
    %107 = vmatprep.subr.mxu0 %v60
    %108 = vmatpush1.xpose.msra.mxu0 %v59
    %109 = vmatprep.subr.mxu0 %v62
    %110 = vmatpush1.xpose.msra.mxu0 %v61
    %111 = vmatprep.subr.mxu0 %v64
    %112 = vmatpush1.xpose.msra.mxu0 %v63
    %113 = vmatprep.subr.mxu0 %v66
    %114 = vmatpush1.xpose.msra.mxu0 %v65
    %115 = vmatprep.subr.mxu0 %v68
    %116 = vmatpush1.xpose.msra.mxu0 %v67
    %117 = vmatprep.subr.mxu0 %v70
    %118 = vmatpush1.xpose.msra.mxu0 %v69
    %119 = vmatprep.subr.mxu0 %v72
    %120 = vmatpush1.xpose.msra.mxu0 %v71
    %121 = vmatprep.subr.mxu0 %v74
    %122 = vmatpush1.xpose.msra.mxu0 %v73
    %123 = vmatprep.subr.mxu0 %v76
    %124 = vmatpush1.xpose.msra.mxu0 %v75
    %125 = vmatprep.subr.mxu0 %v78
    %126 = vmatpush1.xpose.msra.mxu0 %v77
    %127 = vmatprep.subr.mxu0 %v80
    %128 = vmatpush1.xpose.msra.mxu0 %v79
    %129 = vmatprep.subr.mxu0 0.0
    %130 = vmatpush1.xpose.msra.mxu0 0.0
    %131 = vmatprep.subr.mxu0 0.0
    %132 = vmatpush1.xpose.msra.mxu0 0.0
    %133 = vmatprep.subr.mxu0 0.0
    %134 = vmatpush1.xpose.msra.mxu0 0.0
    %135 = vmatprep.subr.mxu0 0.0
    %136 = vmatpush1.xpose.msra.mxu0 0.0
    %137 = vmatprep.subr.mxu0 0.0
    %138 = vmatpush1.xpose.msra.mxu0 0.0
    %139 = vmatprep.subr.mxu0 0.0
    %140 = vmatpush1.xpose.msra.mxu0 0.0
    %141 = vmatprep.subr.mxu0 0.0
    %142 = vmatpush1.xpose.msra.mxu0 0.0
    %143 = vmatprep.subr.mxu0 0.0
    %144 = vmatpush1.xpose.msra.mxu0 0.0
    %145 = vmatprep.subr.mxu0 0.0
    %146 = vmatpush1.xpose.msra.mxu0 0.0
    %147 = vmatprep.subr.mxu0 0.0
    %148 = vmatpush1.xpose.msra.mxu0 0.0
    %149 = vmatprep.subr.mxu0 0.0
    %150 = vmatpush1.xpose.msra.mxu0 0.0
    %151 = vmatprep.subr.mxu0 0.0
    %152 = vmatpush1.xpose.msra.mxu0 0.0
    %153 = vmatprep.subr.mxu0 0.0
    %154 = vmatpush1.xpose.msra.mxu0 0.0
    %155 = vmatprep.subr.mxu0 0.0
    %156 = vmatpush1.xpose.msra.mxu0 0.0
    %157 = vmatprep.subr.mxu0 0.0
    %158 = vmatpush1.xpose.msra.mxu0 0.0
    %159 = vmatprep.subr.mxu0 0.0
    %160 = vmatpush1.xpose.msra.mxu0 0.0
    %161 = vmatprep.mubr.f32.mxu0 %v50
    %162 = vmatmul.mubr.f32.gmra.mrb[0].mxu0 %v49
    %v163 = vpop.f32.mrb[0].mxu0
    %v164 = vadd.f32 0.0, %v163
    %v165 = vpop.f32.mrb[0].mxu0
    %166 = vmatprep.mubr.f32.mxu0 %v52
    %167 = vmatmul.mubr.f32.gmra.mrb[0].mxu0 %v51
    %v168 = vpop.f32.mrb[0].mxu0
    %v169 = vadd.f32 0.0, %v168
    %v170 = vpop.f32.mrb[0].mxu0
    %171 = vmatprep.mubr.f32.mxu0 %v54
    %172 = vmatmul.mubr.f32.gmra.mrb[0].mxu0 %v53
    %v173 = vpop.f32.mrb[0].mxu0
    %v174 = vadd.f32 0.0, %v173
    %v175 = vpop.f32.mrb[0].mxu0
    %176 = vmatprep.mubr.f32.mxu0 %v56
    %177 = vmatmul.mubr.f32.gmra.mrb[0].mxu0 %v55
    %v178 = vpop.f32.mrb[0].mxu0
    %v179 = vadd.f32 0.0, %v178
    %v180 = vpop.f32.mrb[0].mxu0
    %181 = vmatprep.mubr.f32.mxu0 %v58
    %182 = vmatmul.mubr.f32.gmra.mrb[0].mxu0 %v57
    %v183 = vpop.f32.mrb[0].mxu0
    %v184 = vadd.f32 0.0, %v183
    %v185 = vpop.f32.mrb[0].mxu0
    %186 = vmatprep.mubr.f32.mxu0 %v60
    %187 = vmatmul.mubr.f32.gmra.mrb[0].mxu0 %v59
    %v188 = vpop.f32.mrb[0].mxu0
    %v189 = vadd.f32 0.0, %v188
    %v190 = vpop.f32.mrb[0].mxu0
    %191 = vmatprep.mubr.f32.mxu0 %v62
    %192 = vmatmul.mubr.f32.gmra.mrb[0].mxu0 %v61
    %v193 = vpop.f32.mrb[0].mxu0
    %v194 = vadd.f32 0.0, %v193
    %v195 = vpop.f32.mrb[0].mxu0
    %196 = vmatprep.mubr.f32.mxu0 %v64
    %197 = vmatmul.mubr.f32.gmra.mrb[0].mxu0 %v63
    %v198 = vpop.f32.mrb[0].mxu0
    %v199 = vadd.f32 0.0, %v198
    %v200 = vpop.f32.mrb[0].mxu0
    %201 = vmatprep.mubr.f32.mxu0 %v66
    %202 = vmatmul.mubr.f32.gmra.mrb[0].mxu0 %v65
    %v203 = vpop.f32.mrb[0].mxu0
    %v204 = vadd.f32 0.0, %v203
    %v205 = vpop.f32.mrb[0].mxu0
    %206 = vmatprep.mubr.f32.mxu0 %v68
    %207 = vmatmul.mubr.f32.gmra.mrb[0].mxu0 %v67
    %v208 = vpop.f32.mrb[0].mxu0
    %v209 = vadd.f32 0.0, %v208
    %v210 = vpop.f32.mrb[0].mxu0
    %211 = vmatprep.mubr.f32.mxu0 %v70
    %212 = vmatmul.mubr.f32.gmra.mrb[0].mxu0 %v69
    %v213 = vpop.f32.mrb[0].mxu0
    %v214 = vadd.f32 0.0, %v213
    %v215 = vpop.f32.mrb[0].mxu0
    %216 = vmatprep.mubr.f32.mxu0 %v72
    %217 = vmatmul.mubr.f32.gmra.mrb[0].mxu0 %v71
    %v218 = vpop.f32.mrb[0].mxu0
    %v219 = vadd.f32 0.0, %v218
    %v220 = vpop.f32.mrb[0].mxu0
    %221 = vmatprep.mubr.f32.mxu0 %v74
    %222 = vmatmul.mubr.f32.gmra.mrb[0].mxu0 %v73
    %v223 = vpop.f32.mrb[0].mxu0
    %v224 = vadd.f32 0.0, %v223
    %v225 = vpop.f32.mrb[0].mxu0
    %226 = vmatprep.mubr.f32.mxu0 %v76
    %227 = vmatmul.mubr.f32.gmra.mrb[0].mxu0 %v75
    %v228 = vpop.f32.mrb[0].mxu0
    %v229 = vadd.f32 0.0, %v228
    %v230 = vpop.f32.mrb[0].mxu0
    %231 = vmatprep.mubr.f32.mxu0 %v78
    %232 = vmatmul.mubr.f32.gmra.mrb[0].mxu0 %v77
    %v233 = vpop.f32.mrb[0].mxu0
    %v234 = vadd.f32 0.0, %v233
    %v235 = vpop.f32.mrb[0].mxu0
    %236 = vmatprep.mubr.f32.mxu0 %v80
    %237 = vmatmul.mubr.f32.gmra.mrb[0].mxu0 %v79
    %v238 = vpop.f32.mrb[0].mxu0
    %v239 = vadd.f32 0.0, %v238
    %v240 = vpop.f32.mrb[0].mxu0
    %241 = vdwg.mxu0
    %v242 = vadd.f32 %v81, %v164
    %v243 = vadd.f32 %v82, %v169
    %v244 = vadd.f32 %v83, %v174
    %v245 = vadd.f32 %v84, %v179
    %v246 = vadd.f32 %v85, %v184
    %v247 = vadd.f32 %v86, %v189
    %v248 = vadd.f32 %v87, %v194
    %v249 = vadd.f32 %v88, %v199
    %v250 = vadd.f32 %v89, %v204
    %v251 = vadd.f32 %v90, %v209
    %v252 = vadd.f32 %v91, %v214
    %v253 = vadd.f32 %v92, %v219
    %v254 = vadd.f32 %v93, %v224
    %v255 = vadd.f32 %v94, %v229
    %v256 = vadd.f32 %v95, %v234
    %v257 = vadd.f32 %v96, %v239
    %258 = vst [vmem:[#allocation5] sm:$0xff] %v242
    %259 = vst [vmem:[#allocation5 + $0x8] sm:$0xff] %v243
    %260 = vst [vmem:[#allocation5 + $0x10] sm:$0xff] %v244
    %261 = vst [vmem:[#allocation5 + $0x18] sm:$0xff] %v245
    %262 = vst [vmem:[#allocation5 + $0x20] sm:$0xff] %v246
    %263 = vst [vmem:[#allocation5 + $0x28] sm:$0xff] %v247
    %264 = vst [vmem:[#allocation5 + $0x30] sm:$0xff] %v248
    %265 = vst [vmem:[#allocation5 + $0x38] sm:$0xff] %v249
    %266 = vst [vmem:[#allocation5 + $0x40] sm:$0xff] %v250
    %267 = vst [vmem:[#allocation5 + $0x48] sm:$0xff] %v251
    %268 = vst [vmem:[#allocation5 + $0x50] sm:$0xff] %v252
    %269 = vst [vmem:[#allocation5 + $0x58] sm:$0xff] %v253
    %270 = vst [vmem:[#allocation5 + $0x60] sm:$0xff] %v254
    %271 = vst [vmem:[#allocation5 + $0x68] sm:$0xff] %v255
    %272 = vst [vmem:[#allocation5 + $0x70] sm:$0xff] %v256
    %273 = vst [vmem:[#allocation5 + $0x78] sm:$0xff] %v257
    // Predicated region
    $region14: #{tpu_custom_call.1} parent=1 // pred_check
      %p274 = pneg %p29
    $region15: #{tpu_custom_call.1} parent=1 // pred_check_branch
      %276 = sbr.rel (%p274) target = $region17
    $region16: #{tpu_custom_call.1} parent=1 // pred_region
      %v277 = vld [vmem:[#allocation5] sm:$0xff]
      %v278 = vld [vmem:[#allocation5 + $0x8] sm:$0xff]
      %v279 = vld [vmem:[#allocation5 + $0x10] sm:$0xff]
      %v280 = vld [vmem:[#allocation5 + $0x18] sm:$0xff]
      %v281 = vld [vmem:[#allocation5 + $0x20] sm:$0xff]
      %v282 = vld [vmem:[#allocation5 + $0x28] sm:$0xff]
      %v283 = vld [vmem:[#allocation5 + $0x30] sm:$0xff]
      %v284 = vld [vmem:[#allocation5 + $0x38] sm:$0xff]
      %v285 = vld [vmem:[#allocation5 + $0x40] sm:$0xff]
      %v286 = vld [vmem:[#allocation5 + $0x48] sm:$0xff]
      %v287 = vld [vmem:[#allocation5 + $0x50] sm:$0xff]
      %v288 = vld [vmem:[#allocation5 + $0x58] sm:$0xff]
      %v289 = vld [vmem:[#allocation5 + $0x60] sm:$0xff]
      %v290 = vld [vmem:[#allocation5 + $0x68] sm:$0xff]
      %v291 = vld [vmem:[#allocation5 + $0x70] sm:$0xff]
      %v292 = vld [vmem:[#allocation5 + $0x78] sm:$0xff]
      %v293 = vmul.f32 %v277, 0.00048828125
      %v294 = vmul.f32 %v278, 0.00048828125
      %v295 = vmul.f32 %v279, 0.00048828125
      %v296 = vmul.f32 %v280, 0.00048828125
      %v297 = vmul.f32 %v281, 0.00048828125
      %v298 = vmul.f32 %v282, 0.00048828125
      %v299 = vmul.f32 %v283, 0.00048828125
      %v300 = vmul.f32 %v284, 0.00048828125
      %v301 = vmul.f32 %v285, 0.00048828125
      %v302 = vmul.f32 %v286, 0.00048828125
      %v303 = vmul.f32 %v287, 0.00048828125
      %v304 = vmul.f32 %v288, 0.00048828125
      %v305 = vmul.f32 %v289, 0.00048828125
      %v306 = vmul.f32 %v290, 0.00048828125
      %v307 = vmul.f32 %v291, 0.00048828125
      %v308 = vmul.f32 %v292, 0.00048828125
      %309 = vst [vmem:[#allocation5] sm:$0xff] %v293
      %310 = vst [vmem:[#allocation5 + $0x8] sm:$0xff] %v294
      %311 = vst [vmem:[#allocation5 + $0x10] sm:$0xff] %v295
      %312 = vst [vmem:[#allocation5 + $0x18] sm:$0xff] %v296
      %313 = vst [vmem:[#allocation5 + $0x20] sm:$0xff] %v297
      %314 = vst [vmem:[#allocation5 + $0x28] sm:$0xff] %v298
      %315 = vst [vmem:[#allocation5 + $0x30] sm:$0xff] %v299
      %316 = vst [vmem:[#allocation5 + $0x38] sm:$0xff] %v300
      %317 = vst [vmem:[#allocation5 + $0x40] sm:$0xff] %v301
      %318 = vst [vmem:[#allocation5 + $0x48] sm:$0xff] %v302
      %319 = vst [vmem:[#allocation5 + $0x50] sm:$0xff] %v303
      %320 = vst [vmem:[#allocation5 + $0x58] sm:$0xff] %v304
      %321 = vst [vmem:[#allocation5 + $0x60] sm:$0xff] %v305
      %322 = vst [vmem:[#allocation5 + $0x68] sm:$0xff] %v306
      %323 = vst [vmem:[#allocation5 + $0x70] sm:$0xff] %v307
      %324 = vst [vmem:[#allocation5 + $0x78] sm:$0xff] %v308
    $region17: #{tpu_custom_call.1} parent=1 // pred_fallthru
      _
    // Predicated region
    $region18: #{tpu_custom_call.1} parent=1 // pred_check
      _
    $region19: #{tpu_custom_call.1} parent=1 // pred_check_branch
      %326 = sbr.rel (0) target = $region21
    $region20: #{tpu_custom_call.1} parent=1 // pred_region
      %s328 = ssub.s32 2048, 2048
      %329 = vsyncadd [#allocation4], %s328
      %s330 = sshll.u32 [#allocation5], 4
      %s331 = int_to_ptr.vmem [resolvable:$true] %s330
      %336 = dma.vmem_to_hbm [thread:$0]  %s331, 2048, %s1, [#allocation4], 128, 128, 8
    $region21: #{tpu_custom_call.1} parent=1 // pred_fallthru
      _
    // Predicated region
    $region22: #{tpu_custom_call.1} parent=1 // pred_check
      _
    $region23: #{tpu_custom_call.1} parent=1 // pred_check_branch
      %338 = sbr.rel (0) target = $region25
    $region24: #{tpu_custom_call.1} parent=1 // pred_region
      %339 = dma.done [#allocation4], 2048
    $region25: #{tpu_custom_call.1} parent=1 // pred_fallthru
      _
    %340 = vsyncpa [#allocation3], 1
    %341 = vsyncpa [#allocation4], 1

</llo_original>
